<compile_context>
chip_gen: v7x
topology: tpu7x:2x2x1
jax: 0.10.0
libtpu: 0.0.40
codegen_flags: <defaults>
</compile_context>

<pallas_src>
from functools import partial

import jax
import jax.numpy as jnp
import numpy as np
from jax.experimental import pallas as pl
from jax.experimental.pallas import tpu as pltpu


# ---------------------------------------------------------------------------
# Kernels
# ---------------------------------------------------------------------------
def _cbn_fused_kernel(x_ref, w_ref, y_ref, stats_ref, *, eps, inv_n):
    """Single-call path: whole (B,2,F,HW) tensor resident in VMEM.

    x_ref:     (B, 2, F, HW)  input block.
    w_ref:     (5, F, 1) fp32 [Wrr, Wri, Wii, Br, Bi].
    y_ref:     (B, 2, F, HW)  output block.
    stats_ref: (5, F, 1) fp32 [Mr, Mi, Vrr, Vri, Vii] (eps-free batch stats).
    """
    x = x_ref[...]
    xr = x[:, 0].astype(jnp.float32)                       # (B, F, HW)
    xi = x[:, 1].astype(jnp.float32)

    def _mean(v):                                          # (B,F,HW) -> (1,F,1)
        return jnp.sum(jnp.sum(v, axis=2, keepdims=True),
                       axis=0, keepdims=True) * inv_n

    # Torch-style center-then-square (better numerics than E[x^2]-m^2).
    mr = _mean(xr)
    mi = _mean(xi)
    xr_c = xr - mr
    xi_c = xi - mi
    vrr = _mean(xr_c * xr_c)
    vri = _mean(xr_c * xi_c)
    vii = _mean(xi_c * xi_c)

    stats_ref[0] = mr[0]
    stats_ref[1] = mi[0]
    stats_ref[2] = vrr[0]
    stats_ref[3] = vri[0]
    stats_ref[4] = vii[0]

    Wrr = w_ref[0]                                         # (F, 1)
    Wri = w_ref[1]
    Wii = w_ref[2]
    Br = w_ref[3]
    Bi = w_ref[4]

    vrr_e = vrr + eps
    vii_e = vii + eps
    tau = vrr_e + vii_e
    delta = jnp.maximum(vrr_e * vii_e - vri * vri, 0.0)
    s = jnp.sqrt(delta)
    t = jnp.sqrt(tau + 2.0 * s)
    rst = 1.0 / (s * t)
    urr = (s + vii_e) * rst
    uii = (s + vrr_e) * rst
    uri = -vri * rst

    zrr = Wrr * urr + Wri * uri                            # (1, F, 1)
    zri = Wrr * uri + Wri * uii
    zir = Wri * urr + Wii * uri
    zii = Wri * uri + Wii * uii

    yr = (zrr * xr_c + zri * xi_c + Br).astype(y_ref.dtype)   # (B, F, HW)
    yi = (zir * xr_c + zii * xi_c + Bi).astype(y_ref.dtype)
    for b in range(y_ref.shape[0]):                        # static, small B
        y_ref[b, 0] = yr[b]
        y_ref[b, 1] = yi[b]


def _cbn_reduce_kernel(x_ref, stats_ref, *, hw, n_inner):
    """Pass 1: per-channel sums over one (spatial_outer, batch, tile) block.

    x_ref:     (1, 2, F, S)  lane-dense spatial tile.
    stats_ref: (1, 5, F, 1)  resident fp32 accumulator
                             [sum_r, sum_i, sum_rr, sum_ri, sum_ii].
    Tail lanes (>= hw) and clamped duplicate blocks are masked to zero.
    """
    so = pl.program_id(0)
    si = pl.program_id(2)

    @pl.when(si == 0)
    def _init():
        stats_ref[...] = jnp.zeros_like(stats_ref)

    f, s = x_ref.shape[2], x_ref.shape[3]
    blk = so * n_inner + si
    lane = jax.lax.broadcasted_iota(jnp.int32, (f, s), 1)
    valid = (blk * s + lane) < hw

    xr = jnp.where(valid, x_ref[0, 0].astype(jnp.float32), 0.0)
    xi = jnp.where(valid, x_ref[0, 1].astype(jnp.float32), 0.0)

    # Lane reductions go to the otherwise-idle XLU; pass stays HBM-bound.
    stats_ref[0, 0] += jnp.sum(xr, axis=1, keepdims=True)
    stats_ref[0, 1] += jnp.sum(xi, axis=1, keepdims=True)
    stats_ref[0, 2] += jnp.sum(xr * xr, axis=1, keepdims=True)
    stats_ref[0, 3] += jnp.sum(xr * xi, axis=1, keepdims=True)
    stats_ref[0, 4] += jnp.sum(xi * xi, axis=1, keepdims=True)


def _cbn_apply_kernel(coef_ref, x_ref, y_ref):
    """Pass 2: y = Z * (x - mean) + bias, streamed over (batch, spatial) tiles.

    coef_ref: (8, F, 1) resident fp32 table [zrr, zri, zir, zii, br, bi, mr, mi]
              (the (F,1)->(F,S) broadcasts stay operand-level lane broadcasts).
    x_ref / y_ref: (1, 2, F, S).  Tail blocks: OOB writes are discarded.
    """
    xr = x_ref[0, 0]
    xi = x_ref[0, 1]

    zrr, zri, zir, zii = coef_ref[0], coef_ref[1], coef_ref[2], coef_ref[3]
    br, bi, mr, mi = coef_ref[4], coef_ref[5], coef_ref[6], coef_ref[7]

    xr_c = xr - mr
    xi_c = xi - mi
    y_ref[0, 0] = (zrr * xr_c + zri * xi_c + br).astype(y_ref.dtype)
    y_ref[0, 1] = (zir * xr_c + zii * xi_c + bi).astype(y_ref.dtype)


# ---------------------------------------------------------------------------
# Tiling helpers
# ---------------------------------------------------------------------------
def _vmem_budget_bytes():
    """~75% of reported per-core VMEM (v5e/v6e: 128 MiB, v7x: 64 MiB)."""
    try:
        cap = int(pltpu.get_tpu_info().vmem_capacity_bytes)
    except Exception:
        cap = 64 * 1024 * 1024                      # conservative: v7x floor
    return (cap * 3) // 4


def _pick_spatial_tile(hw, feat, itemsize, budget):
    """Largest multiple-of-128 tile whose pipelined working set fits `budget`.

    Per grid step (apply pass, the heavier one): double-buffered input and
    output blocks of 2*feat sublane rows plus ~6 fp32 per-lane temporaries.
    The grid uses cdiv + masking, so S need not divide hw.
    """
    if hw <= 128:
        return hw                                   # full extent, single tile
    per_lane = feat * (8 * itemsize + 24)
    max_s = max((budget // per_lane) // 128 * 128, 128)
    return int(min(max_s, (hw // 128) * 128))


# ---------------------------------------------------------------------------
# O(F) coefficient fusion (plain JAX, runs once between the two passes)
# ---------------------------------------------------------------------------
def _fuse_coefficients(mr, mi, vrr, vri, vii, Wrr, Wri, Wii, Br, Bi, *, eps):
    f32 = jnp.float32
    mr, mi = mr.astype(f32), mi.astype(f32)
    # Clamp: the streaming pass uses the one-pass E[x^2]-mean^2 form, which can
    # round slightly negative for large-mean/small-variance channels.
    vrr = jnp.maximum(vrr.astype(f32), 0.0) + eps
    vri = vri.astype(f32)
    vii = jnp.maximum(vii.astype(f32), 0.0) + eps

    tau = vrr + vii
    delta = jnp.maximum(vrr * vii - vri * vri, 0.0)
    s = jnp.sqrt(delta)
    t = jnp.sqrt(tau + 2.0 * s)
    rst = 1.0 / (s * t)
    urr = (s + vii) * rst
    uii = (s + vrr) * rst
    uri = -vri * rst

    if Wrr is None:                                   # affine=False
        zrr, zri, zir, zii = urr, uri, uri, uii
        br = jnp.zeros_like(mr)
        bi = jnp.zeros_like(mr)
    else:
        Wrr, Wri, Wii = (w.astype(f32) for w in (Wrr, Wri, Wii))
        zrr = Wrr * urr + Wri * uri
        zri = Wrr * uri + Wri * uii
        zir = Wri * urr + Wii * uri
        zii = Wri * uri + Wii * uii
        br, bi = Br.astype(f32), Bi.astype(f32)

    # Kept fp32 on every generation: both passes are HBM-bound so fp32
    # coefficients are free, and v5e has no native bf16 VPU anyway.
    coef = jnp.stack([zrr, zri, zir, zii, br, bi, mr, mi], axis=0)   # (8, F)
    return coef[:, :, None]                                          # (8, F, 1)


def update_running_stats(running, batch_stats, momentum=0.1):
    """Functional analogue of the torch lerp_ buffer updates (training mode).

    This module lerps the eps-free covariance (eps is added after the lerp in
    the torch source), which matches the eps-free batch_stats returned here.
    """
    # TODO(synk): num_batches_tracked counter / momentum=None (cumulative
    #             average) path is not modeled; caller owns that bookkeeping.
    keymap = dict(RMr="Mr", RMi="Mi", RVrr="Vrr", RVri="Vri", RVii="Vii")
    return {k: running[k] + momentum * (batch_stats[keymap[k]] - running[k])
            for k in running}


# ---------------------------------------------------------------------------
# Wrapper
# ---------------------------------------------------------------------------
def complex_batch_norm(x, Wrr, Wri, Wii, Br, Bi, *, eps=1e-5, training=True,
                       running_stats=None, return_batch_stats=False,
                       fused=None):
    """x: (B, C, H, W) NCHW with C = 2 * num_features_per_half.

    fused: None = auto (single-call VMEM-resident path when it fits),
           True / False = force.
    """
    B, C, H, W = x.shape
    assert C % 2 == 0, "channel dim must hold [real; imag] halves"
    F = C // 2
    HW = H * W

    x4 = x.reshape(B, 2, F, HW)          # metadata-only reshape: no HBM traffic
    budget = _vmem_budget_bytes()
    itemsize = x.dtype.itemsize
    x_bytes = x4.size * itemsize

    use_batch_stats = training or running_stats is None

    # Fused path working-set estimate: in + out blocks + ~8 fp32 (B,F,HW)
    # temporaries (xr/xi, centered copies, products/output before cast).
    half_elems = B * F * HW
    fused_ws = 2 * x_bytes + 32 * half_elems
    if fused is None:
        use_fused = use_batch_stats and fused_ws <= budget
    else:
        use_fused = bool(fused) and use_batch_stats

    batch_stats = None

    if use_fused:
        # -------- Fused single-call path: 1 HBM read + 1 HBM write ----------
        if Wrr is None:                  # affine=False -> identity mix, 0 bias
            w = jnp.stack([jnp.ones((F,), jnp.float32),
                           jnp.zeros((F,), jnp.float32),
                           jnp.ones((F,), jnp.float32),
                           jnp.zeros((F,), jnp.float32),
                           jnp.zeros((F,), jnp.float32)], axis=0)
        else:
            w = jnp.stack([Wrr, Wri, Wii, Br, Bi], axis=0).astype(jnp.float32)
        w = w[:, :, None]                # (5, F, 1), channels on sublanes

        fused_ce = pl.CostEstimate(
            flops=int(10 * x4.size), transcendentals=int(4 * F),
            bytes_accessed=int(2 * x_bytes + 10 * F * 4))

        y4, stats = pl.pallas_call(
            partial(_cbn_fused_kernel, eps=float(eps),
                    inv_n=1.0 / float(B * HW)),
            out_shape=(jax.ShapeDtypeStruct((B, 2, F, HW), x.dtype),
                       jax.ShapeDtypeStruct((5, F, 1), jnp.float32)),
            grid=(1,),
            in_specs=[pl.BlockSpec((B, 2, F, HW), lambda i: (0, 0, 0, 0)),
                      pl.BlockSpec((5, F, 1), lambda i: (0, 0, 0))],
            out_specs=(pl.BlockSpec((B, 2, F, HW), lambda i: (0, 0, 0, 0)),
                       pl.BlockSpec((5, F, 1), lambda i: (0, 0, 0))),
            compiler_params=pltpu.CompilerParams(
                dimension_semantics=("arbitrary",),
                vmem_limit_bytes=budget),
            cost_estimate=fused_ce,
        )(x4, w)

        batch_stats = dict(Mr=stats[0, :, 0], Mi=stats[1, :, 0],
                           Vrr=stats[2, :, 0], Vri=stats[3, :, 0],
                           Vii=stats[4, :, 0])
    else:
        # -------- Streaming two-pass path -----------------------------------
        S = _pick_spatial_tile(HW, F, itemsize, budget)
        n_blk = pl.cdiv(HW, S)
        # Spatial-outer "parallel" split so v7x megacore sharding does not
        # depend on B (e.g. B == 1 streaming inference).
        n_outer = 2 if n_blk >= 2 else 1
        n_inner = pl.cdiv(n_blk, n_outer)

        if use_batch_stats:
            reduce_ce = pl.CostEstimate(
                flops=int(5 * x4.size), transcendentals=0,
                bytes_accessed=int(x_bytes + n_outer * B * 5 * F * 4))

            stats = pl.pallas_call(
                partial(_cbn_reduce_kernel, hw=HW, n_inner=n_inner),
                out_shape=jax.ShapeDtypeStruct((n_outer * B, 5, F, 1),
                                               jnp.float32),
                grid=(n_outer, B, n_inner),
                in_specs=[pl.BlockSpec(
                    (1, 2, F, S),
                    lambda so, b, si: (b, 0, 0,
                                       jnp.minimum(so * n_inner + si,
                                                   n_blk - 1)))],
                out_specs=pl.BlockSpec((1, 5, F, 1),
                                       lambda so, b, si: (so * B + b, 0, 0, 0)),
                compiler_params=pltpu.CompilerParams(
                    dimension_semantics=("parallel", "parallel", "arbitrary"),
                    vmem_limit_bytes=budget),
                cost_estimate=reduce_ce,
            )(x4)

            tot = jnp.sum(stats, axis=0)[..., 0]          # (5, F), fp32
            inv_n = 1.0 / float(B * HW)
            mr = tot[0] * inv_n
            mi = tot[1] * inv_n
            vrr = tot[2] * inv_n - mr * mr                # E[x^2] - mean^2
            vri = tot[3] * inv_n - mr * mi
            vii = tot[4] * inv_n - mi * mi
            batch_stats = dict(Mr=mr, Mi=mi, Vrr=vrr, Vri=vri, Vii=vii)
        else:
            mr, mi, vrr, vri, vii = (running_stats[k]
                                     for k in ("RMr", "RMi", "RVrr",
                                               "RVri", "RVii"))

        coef = _fuse_coefficients(mr, mi, vrr, vri, vii, Wrr, Wri, Wii, Br, Bi,
                                  eps=eps)                # (8, F, 1) fp32

        apply_ce = pl.CostEstimate(
            flops=int(4 * x4.size), transcendentals=0,
            bytes_accessed=int(2 * x_bytes + 8 * F * 4))

        # TODO(synk): if the caller no longer needs x, add
        #             input_output_aliases={1: 0} to reuse x's HBM allocation.
        y4 = pl.pallas_call(
            _cbn_apply_kernel,
            out_shape=jax.ShapeDtypeStruct((B, 2, F, HW), x.dtype),
            grid=(B, n_blk),
            in_specs=[pl.BlockSpec((8, F, 1), lambda b, s: (0, 0, 0)),
                      pl.BlockSpec((1, 2, F, S), lambda b, s: (b, 0, 0, s))],
            out_specs=pl.BlockSpec((1, 2, F, S), lambda b, s: (b, 0, 0, s)),
            compiler_params=pltpu.CompilerParams(
                dimension_semantics=("parallel", "parallel"),
                vmem_limit_bytes=budget),
            cost_estimate=apply_ce,
        )(coef, x4)

    y = y4.reshape(B, C, H, W)                            # metadata-only
    if return_batch_stats:
        return y, batch_stats
    return y


# ---------------------------------------------------------------------------
# Pure-JAX reference (transcription of the torch forward, training mode)
# ---------------------------------------------------------------------------
def _reference(x, Wrr, Wri, Wii, Br, Bi, eps=1e-5):
    F = x.shape[1] // 2
    xr, xi = x[:, :F], x[:, F:]
    red = (0, 2, 3)
    vdim = (1, F, 1, 1)
    Mr = jnp.mean(xr, axis=red, keepdims=True)
    Mi = jnp.mean(xi, axis=red, keepdims=True)
    xr, xi = xr - Mr, xi - Mi
    Vrr = jnp.mean(xr * xr, axis=red, keepdims=True) + eps
    Vri = jnp.mean(xr * xi, axis=red, keepdims=True)
    Vii = jnp.mean(xi * xi, axis=red, keepdims=True) + eps
    tau = Vrr + Vii
    delta = Vrr * Vii - Vri * Vri
    s = jnp.sqrt(delta)
    t = jnp.sqrt(tau + 2 * s)
    rst = 1.0 / (s * t)
    Urr = (s + Vii) * rst
    Uii = (s + Vrr) * rst
    Uri = -Vri * rst
    Wrr, Wri, Wii = Wrr.reshape(vdim), Wri.reshape(vdim), Wii.reshape(vdim)
    Zrr = Wrr * Urr + Wri * Uri
    Zri = Wrr * Uri + Wri * Uii
    Zir = Wri * Urr + Wii * Uri
    Zii = Wri * Uri + Wii * Uii
    yr = Zrr * xr + Zri * xi + Br.reshape(vdim)
    yi = Zir * xr + Zii * xi + Bi.reshape(vdim)
    return jnp.concatenate([yr, yi], axis=1)


if __name__ == "__main__":
    key = jax.random.PRNGKey(0)
    kx1, kx2, kw1, kw2 = jax.random.split(key, 4)

    # ---- Test 1: small shape -> fused single-call path, plus forced two-pass
    B, C, H, W = 2, 8, 16, 16            # C = num_features (total); F = 4
    F = C // 2
    x = jax.random.normal(kx1, (B, C, H, W), dtype=jnp.float32)

    # Deterministic parameter init matching reset_parameters():
    Wrr = jnp.ones((F,), jnp.float32)
    Wii = jnp.ones((F,), jnp.float32)
    Wri = jax.random.uniform(kw1, (F,), jnp.float32, minval=-0.9, maxval=0.9)
    Br = jnp.zeros((F,), jnp.float32)
    Bi = jnp.zeros((F,), jnp.float32)

    ref = _reference(x, Wrr, Wri, Wii, Br, Bi)

    out_fused = jax.jit(complex_batch_norm)(x, Wrr, Wri, Wii, Br, Bi)
    out_fused = jax.block_until_ready(out_fused)
    np.testing.assert_allclose(np.asarray(out_fused), np.asarray(ref),
                               rtol=1e-5, atol=1e-5)

    out_2pass = jax.jit(partial(complex_batch_norm, fused=False))(
        x, Wrr, Wri, Wii, Br, Bi)
    out_2pass = jax.block_until_ready(out_2pass)
    np.testing.assert_allclose(np.asarray(out_2pass), np.asarray(ref),
                               rtol=1e-5, atol=1e-5)

    # ---- Test 2: HW not a multiple of 128, B=1 -> exercises cdiv tail
    #              masking and the spatial-outer megacore split (two-pass).
    B2, C2, H2, W2 = 1, 6, 10, 20        # F = 3, HW = 200
    F2 = C2 // 2
    x2 = jax.random.normal(kx2, (B2, C2, H2, W2), dtype=jnp.float32)
    Wrr2 = jnp.ones((F2,), jnp.float32)
    Wii2 = jnp.ones((F2,), jnp.float32)
    Wri2 = jax.random.uniform(kw2, (F2,), jnp.float32, minval=-0.9, maxval=0.9)
    Br2 = jnp.zeros((F2,), jnp.float32)
    Bi2 = jnp.zeros((F2,), jnp.float32)

    ref2 = _reference(x2, Wrr2, Wri2, Wii2, Br2, Bi2)
    out2 = jax.jit(partial(complex_batch_norm, fused=False))(
        x2, Wrr2, Wri2, Wii2, Br2, Bi2)
    out2 = jax.block_until_ready(out2)
    np.testing.assert_allclose(np.asarray(out2), np.asarray(ref2),
                               rtol=1e-5, atol=1e-5)

    print("KERNEL_OK")
</pallas_src>

<mosaic_0001>
module attributes {stable_mosaic.version = 11 : i64} {
  func.func @_cbn_fused_kernel(%arg0: i32, %arg1: memref<2x2x4x256xf32, #tpu.memory_space<vmem>>, %arg2: memref<5x4x1xf32, #tpu.memory_space<vmem>>, %arg3: memref<2x2x4x256xf32, #tpu.memory_space<vmem>>, %arg4: memref<5x4x1xf32, #tpu.memory_space<vmem>>) attributes {dimension_semantics = [#tpu.dimension_semantics<arbitrary>], iteration_bounds = array<i64: 1>, scalar_prefetch = 0 : i64, scratch_operands = 0 : i64, tpu.core_type = #tpu.core_type<tc>, window_params = [{pipeline_mode = #tpu.pipeline_mode<synchronous>, transform_indices = @transform_0, window_bounds = array<i64: 2, 2, 4, 256>}, {pipeline_mode = #tpu.pipeline_mode<synchronous>, transform_indices = @transform_1, window_bounds = array<i64: 5, 4, 1>}, {pipeline_mode = #tpu.pipeline_mode<synchronous>, transform_indices = @transform_2, window_bounds = array<i64: 2, 2, 4, 256>}, {pipeline_mode = #tpu.pipeline_mode<synchronous>, transform_indices = @transform_3, window_bounds = array<i64: 5, 4, 1>}]} {
    %c0 = arith.constant 0 : index
    %c0_0 = arith.constant 0 : index
    %c0_1 = arith.constant 0 : index
    %c0_2 = arith.constant 0 : index
    %0 = vector.load %arg1[%c0, %c0_0, %c0_1, %c0_2] : memref<2x2x4x256xf32, #tpu.memory_space<vmem>>, vector<2x2x4x256xf32>
    %1 = vector.extract_strided_slice %0 {offsets = [0, 0, 0, 0], sizes = [2, 1, 4, 256], strides = [1, 1, 1, 1]} : vector<2x2x4x256xf32> to vector<2x1x4x256xf32>
    %2 = vector.shape_cast %1 : vector<2x1x4x256xf32> to vector<2x4x256xf32>
    %3 = vector.extract_strided_slice %0 {offsets = [0, 1, 0, 0], sizes = [2, 1, 4, 256], strides = [1, 1, 1, 1]} : vector<2x2x4x256xf32> to vector<2x1x4x256xf32>
    %4 = vector.shape_cast %3 : vector<2x1x4x256xf32> to vector<2x4x256xf32>
    %cst = arith.constant dense<0.000000e+00> : vector<2x4xf32>
    %5 = vector.multi_reduction <add>, %2, %cst [2] : vector<2x4x256xf32> to vector<2x4xf32>
    %6 = vector.shape_cast %5 : vector<2x4xf32> to vector<2x4x1xf32>
    %cst_3 = arith.constant dense<0.000000e+00> : vector<4x1xf32>
    %7 = vector.multi_reduction <add>, %6, %cst_3 [0] : vector<2x4x1xf32> to vector<4x1xf32>
    %8 = vector.shape_cast %7 : vector<4x1xf32> to vector<1x4x1xf32>
    %cst_4 = arith.constant 0.001953125 : f32
    %9 = vector.broadcast %cst_4 : f32 to vector<1x4x1xf32>
    %10 = arith.mulf %8, %9 : vector<1x4x1xf32>
    %cst_5 = arith.constant dense<0.000000e+00> : vector<2x4xf32>
    %11 = vector.multi_reduction <add>, %4, %cst_5 [2] : vector<2x4x256xf32> to vector<2x4xf32>
    %12 = vector.shape_cast %11 : vector<2x4xf32> to vector<2x4x1xf32>
    %cst_6 = arith.constant dense<0.000000e+00> : vector<4x1xf32>
    %13 = vector.multi_reduction <add>, %12, %cst_6 [0] : vector<2x4x1xf32> to vector<4x1xf32>
    %14 = vector.shape_cast %13 : vector<4x1xf32> to vector<1x4x1xf32>
    %cst_7 = arith.constant 0.001953125 : f32
    %15 = vector.broadcast %cst_7 : f32 to vector<1x4x1xf32>
    %16 = arith.mulf %14, %15 : vector<1x4x1xf32>
    %17 = vector.broadcast %10 : vector<1x4x1xf32> to vector<2x4x256xf32>
    %18 = arith.subf %2, %17 : vector<2x4x256xf32>
    %19 = vector.broadcast %16 : vector<1x4x1xf32> to vector<2x4x256xf32>
    %20 = arith.subf %4, %19 : vector<2x4x256xf32>
    %21 = arith.mulf %18, %18 : vector<2x4x256xf32>
    %cst_8 = arith.constant dense<0.000000e+00> : vector<2x4xf32>
    %22 = vector.multi_reduction <add>, %21, %cst_8 [2] : vector<2x4x256xf32> to vector<2x4xf32>
    %23 = vector.shape_cast %22 : vector<2x4xf32> to vector<2x4x1xf32>
    %cst_9 = arith.constant dense<0.000000e+00> : vector<4x1xf32>
    %24 = vector.multi_reduction <add>, %23, %cst_9 [0] : vector<2x4x1xf32> to vector<4x1xf32>
    %25 = vector.shape_cast %24 : vector<4x1xf32> to vector<1x4x1xf32>
    %cst_10 = arith.constant 0.001953125 : f32
    %26 = vector.broadcast %cst_10 : f32 to vector<1x4x1xf32>
    %27 = arith.mulf %25, %26 : vector<1x4x1xf32>
    %28 = arith.mulf %18, %20 : vector<2x4x256xf32>
    %cst_11 = arith.constant dense<0.000000e+00> : vector<2x4xf32>
    %29 = vector.multi_reduction <add>, %28, %cst_11 [2] : vector<2x4x256xf32> to vector<2x4xf32>
    %30 = vector.shape_cast %29 : vector<2x4xf32> to vector<2x4x1xf32>
    %cst_12 = arith.constant dense<0.000000e+00> : vector<4x1xf32>
    %31 = vector.multi_reduction <add>, %30, %cst_12 [0] : vector<2x4x1xf32> to vector<4x1xf32>
    %32 = vector.shape_cast %31 : vector<4x1xf32> to vector<1x4x1xf32>
    %cst_13 = arith.constant 0.001953125 : f32
    %33 = vector.broadcast %cst_13 : f32 to vector<1x4x1xf32>
    %34 = arith.mulf %32, %33 : vector<1x4x1xf32>
    %35 = arith.mulf %20, %20 : vector<2x4x256xf32>
    %cst_14 = arith.constant dense<0.000000e+00> : vector<2x4xf32>
    %36 = vector.multi_reduction <add>, %35, %cst_14 [2] : vector<2x4x256xf32> to vector<2x4xf32>
    %37 = vector.shape_cast %36 : vector<2x4xf32> to vector<2x4x1xf32>
    %cst_15 = arith.constant dense<0.000000e+00> : vector<4x1xf32>
    %38 = vector.multi_reduction <add>, %37, %cst_15 [0] : vector<2x4x1xf32> to vector<4x1xf32>
    %39 = vector.shape_cast %38 : vector<4x1xf32> to vector<1x4x1xf32>
    %cst_16 = arith.constant 0.001953125 : f32
    %40 = vector.broadcast %cst_16 : f32 to vector<1x4x1xf32>
    %41 = arith.mulf %39, %40 : vector<1x4x1xf32>
    %42 = vector.shape_cast %10 : vector<1x4x1xf32> to vector<4x1xf32>
    %c0_17 = arith.constant 0 : index
    %c0_18 = arith.constant 0 : index
    %c0_19 = arith.constant 0 : index
    %43 = vector.load %arg4[%c0_17, %c0_18, %c0_19] : memref<5x4x1xf32, #tpu.memory_space<vmem>>, vector<1x4x1xf32>
    %44 = vector.shape_cast %43 : vector<1x4x1xf32> to vector<4x1xf32>
    %45 = vector.shape_cast %42 : vector<4x1xf32> to vector<1x4x1xf32>
    tpu.vector_store %arg4[%c0_17, %c0_18, %c0_19], %45 {strides = array<i32>} : memref<5x4x1xf32, #tpu.memory_space<vmem>>, vector<1x4x1xf32>,
    %46 = vector.shape_cast %16 : vector<1x4x1xf32> to vector<4x1xf32>
    %c1 = arith.constant 1 : index
    %c0_20 = arith.constant 0 : index
    %c0_21 = arith.constant 0 : index
    %47 = vector.load %arg4[%c1, %c0_20, %c0_21] : memref<5x4x1xf32, #tpu.memory_space<vmem>>, vector<1x4x1xf32>
    %48 = vector.shape_cast %47 : vector<1x4x1xf32> to vector<4x1xf32>
    %49 = vector.shape_cast %46 : vector<4x1xf32> to vector<1x4x1xf32>
    tpu.vector_store %arg4[%c1, %c0_20, %c0_21], %49 {strides = array<i32>} : memref<5x4x1xf32, #tpu.memory_space<vmem>>, vector<1x4x1xf32>,
    %50 = vector.shape_cast %27 : vector<1x4x1xf32> to vector<4x1xf32>
    %c2 = arith.constant 2 : index
    %c0_22 = arith.constant 0 : index
    %c0_23 = arith.constant 0 : index
    %51 = vector.load %arg4[%c2, %c0_22, %c0_23] : memref<5x4x1xf32, #tpu.memory_space<vmem>>, vector<1x4x1xf32>
    %52 = vector.shape_cast %51 : vector<1x4x1xf32> to vector<4x1xf32>
    %53 = vector.shape_cast %50 : vector<4x1xf32> to vector<1x4x1xf32>
    tpu.vector_store %arg4[%c2, %c0_22, %c0_23], %53 {strides = array<i32>} : memref<5x4x1xf32, #tpu.memory_space<vmem>>, vector<1x4x1xf32>,
    %54 = vector.shape_cast %34 : vector<1x4x1xf32> to vector<4x1xf32>
    %c3 = arith.constant 3 : index
    %c0_24 = arith.constant 0 : index
    %c0_25 = arith.constant 0 : index
    %55 = vector.load %arg4[%c3, %c0_24, %c0_25] : memref<5x4x1xf32, #tpu.memory_space<vmem>>, vector<1x4x1xf32>
    %56 = vector.shape_cast %55 : vector<1x4x1xf32> to vector<4x1xf32>
    %57 = vector.shape_cast %54 : vector<4x1xf32> to vector<1x4x1xf32>
    tpu.vector_store %arg4[%c3, %c0_24, %c0_25], %57 {strides = array<i32>} : memref<5x4x1xf32, #tpu.memory_space<vmem>>, vector<1x4x1xf32>,
    %58 = vector.shape_cast %41 : vector<1x4x1xf32> to vector<4x1xf32>
    %c4 = arith.constant 4 : index
    %c0_26 = arith.constant 0 : index
    %c0_27 = arith.constant 0 : index
    %59 = vector.load %arg4[%c4, %c0_26, %c0_27] : memref<5x4x1xf32, #tpu.memory_space<vmem>>, vector<1x4x1xf32>
    %60 = vector.shape_cast %59 : vector<1x4x1xf32> to vector<4x1xf32>
    %61 = vector.shape_cast %58 : vector<4x1xf32> to vector<1x4x1xf32>
    tpu.vector_store %arg4[%c4, %c0_26, %c0_27], %61 {strides = array<i32>} : memref<5x4x1xf32, #tpu.memory_space<vmem>>, vector<1x4x1xf32>,
    %c0_28 = arith.constant 0 : index
    %c0_29 = arith.constant 0 : index
    %c0_30 = arith.constant 0 : index
    %62 = vector.load %arg2[%c0_28, %c0_29, %c0_30] : memref<5x4x1xf32, #tpu.memory_space<vmem>>, vector<1x4x1xf32>
    %63 = vector.shape_cast %62 : vector<1x4x1xf32> to vector<4x1xf32>
    %c1_31 = arith.constant 1 : index
    %c0_32 = arith.constant 0 : index
    %c0_33 = arith.constant 0 : index
    %64 = vector.load %arg2[%c1_31, %c0_32, %c0_33] : memref<5x4x1xf32, #tpu.memory_space<vmem>>, vector<1x4x1xf32>
    %65 = vector.shape_cast %64 : vector<1x4x1xf32> to vector<4x1xf32>
    %c2_34 = arith.constant 2 : index
    %c0_35 = arith.constant 0 : index
    %c0_36 = arith.constant 0 : index
    %66 = vector.load %arg2[%c2_34, %c0_35, %c0_36] : memref<5x4x1xf32, #tpu.memory_space<vmem>>, vector<1x4x1xf32>
    %67 = vector.shape_cast %66 : vector<1x4x1xf32> to vector<4x1xf32>
    %c3_37 = arith.constant 3 : index
    %c0_38 = arith.constant 0 : index
    %c0_39 = arith.constant 0 : index
    %68 = vector.load %arg2[%c3_37, %c0_38, %c0_39] : memref<5x4x1xf32, #tpu.memory_space<vmem>>, vector<1x4x1xf32>
    %69 = vector.shape_cast %68 : vector<1x4x1xf32> to vector<4x1xf32>
    %c4_40 = arith.constant 4 : index
    %c0_41 = arith.constant 0 : index
    %c0_42 = arith.constant 0 : index
    %70 = vector.load %arg2[%c4_40, %c0_41, %c0_42] : memref<5x4x1xf32, #tpu.memory_space<vmem>>, vector<1x4x1xf32>
    %71 = vector.shape_cast %70 : vector<1x4x1xf32> to vector<4x1xf32>
    %cst_43 = arith.constant 9.99999974E-6 : f32
    %72 = vector.broadcast %cst_43 : f32 to vector<1x4x1xf32>
    %73 = arith.addf %27, %72 : vector<1x4x1xf32>
    %cst_44 = arith.constant 9.99999974E-6 : f32
    %74 = vector.broadcast %cst_44 : f32 to vector<1x4x1xf32>
    %75 = arith.addf %41, %74 : vector<1x4x1xf32>
    %76 = arith.addf %73, %75 : vector<1x4x1xf32>
    %77 = arith.mulf %73, %75 : vector<1x4x1xf32>
    %78 = arith.mulf %34, %34 : vector<1x4x1xf32>
    %79 = arith.subf %77, %78 : vector<1x4x1xf32>
    %cst_45 = arith.constant 0.000000e+00 : f32
    %80 = vector.broadcast %cst_45 : f32 to vector<1x4x1xf32>
    %81 = arith.maximumf %79, %80 : vector<1x4x1xf32>
    %82 = math.sqrt %81 : vector<1x4x1xf32>
    %cst_46 = arith.constant 2.000000e+00 : f32
    %83 = vector.broadcast %cst_46 : f32 to vector<1x4x1xf32>
    %84 = arith.mulf %83, %82 : vector<1x4x1xf32>
    %85 = arith.addf %76, %84 : vector<1x4x1xf32>
    %86 = math.sqrt %85 : vector<1x4x1xf32>
    %87 = arith.mulf %82, %86 : vector<1x4x1xf32>
    %cst_47 = arith.constant 1.000000e+00 : f32
    %88 = vector.broadcast %cst_47 : f32 to vector<1x4x1xf32>
    %89 = arith.divf %88, %87 : vector<1x4x1xf32>
    %90 = arith.addf %82, %75 : vector<1x4x1xf32>
    %91 = arith.mulf %90, %89 : vector<1x4x1xf32>
    %92 = arith.addf %82, %73 : vector<1x4x1xf32>
    %93 = arith.mulf %92, %89 : vector<1x4x1xf32>
    %cst_48 = arith.constant 0.000000e+00 : f32
    %94 = vector.broadcast %cst_48 : f32 to vector<1x4x1xf32>
    %95 = arith.subf %94, %34 : vector<1x4x1xf32>
    %96 = arith.mulf %95, %89 : vector<1x4x1xf32>
    %97 = vector.shape_cast %63 : vector<4x1xf32> to vector<1x4x1xf32>
    %98 = arith.mulf %97, %91 : vector<1x4x1xf32>
    %99 = vector.shape_cast %65 : vector<4x1xf32> to vector<1x4x1xf32>
    %100 = arith.mulf %99, %96 : vector<1x4x1xf32>
    %101 = arith.addf %98, %100 : vector<1x4x1xf32>
    %102 = vector.shape_cast %63 : vector<4x1xf32> to vector<1x4x1xf32>
    %103 = arith.mulf %102, %96 : vector<1x4x1xf32>
    %104 = vector.shape_cast %65 : vector<4x1xf32> to vector<1x4x1xf32>
    %105 = arith.mulf %104, %93 : vector<1x4x1xf32>
    %106 = arith.addf %103, %105 : vector<1x4x1xf32>
    %107 = vector.shape_cast %65 : vector<4x1xf32> to vector<1x4x1xf32>
    %108 = arith.mulf %107, %91 : vector<1x4x1xf32>
    %109 = vector.shape_cast %67 : vector<4x1xf32> to vector<1x4x1xf32>
    %110 = arith.mulf %109, %96 : vector<1x4x1xf32>
    %111 = arith.addf %108, %110 : vector<1x4x1xf32>
    %112 = vector.shape_cast %65 : vector<4x1xf32> to vector<1x4x1xf32>
    %113 = arith.mulf %112, %96 : vector<1x4x1xf32>
    %114 = vector.shape_cast %67 : vector<4x1xf32> to vector<1x4x1xf32>
    %115 = arith.mulf %114, %93 : vector<1x4x1xf32>
    %116 = arith.addf %113, %115 : vector<1x4x1xf32>
    %117 = vector.broadcast %101 : vector<1x4x1xf32> to vector<2x4x256xf32>
    %118 = arith.mulf %117, %18 : vector<2x4x256xf32>
    %119 = vector.broadcast %106 : vector<1x4x1xf32> to vector<2x4x256xf32>
    %120 = arith.mulf %119, %20 : vector<2x4x256xf32>
    %121 = arith.addf %118, %120 : vector<2x4x256xf32>
    %122 = vector.shape_cast %69 : vector<4x1xf32> to vector<1x4x1xf32>
    %123 = vector.broadcast %122 : vector<1x4x1xf32> to vector<2x4x256xf32>
    %124 = arith.addf %121, %123 : vector<2x4x256xf32>
    %125 = vector.broadcast %111 : vector<1x4x1xf32> to vector<2x4x256xf32>
    %126 = arith.mulf %125, %18 : vector<2x4x256xf32>
    %127 = vector.broadcast %116 : vector<1x4x1xf32> to vector<2x4x256xf32>
    %128 = arith.mulf %127, %20 : vector<2x4x256xf32>
    %129 = arith.addf %126, %128 : vector<2x4x256xf32>
    %130 = vector.shape_cast %71 : vector<4x1xf32> to vector<1x4x1xf32>
    %131 = vector.broadcast %130 : vector<1x4x1xf32> to vector<2x4x256xf32>
    %132 = arith.addf %129, %131 : vector<2x4x256xf32>
    %133 = vector.extract_strided_slice %124 {offsets = [0, 0, 0], sizes = [1, 4, 256], strides = [1, 1, 1]} : vector<2x4x256xf32> to vector<1x4x256xf32>
    %134 = vector.shape_cast %133 : vector<1x4x256xf32> to vector<4x256xf32>
    %c0_49 = arith.constant 0 : index
    %c0_50 = arith.constant 0 : index
    %c0_51 = arith.constant 0 : index
    %c0_52 = arith.constant 0 : index
    %135 = vector.load %arg3[%c0_49, %c0_50, %c0_51, %c0_52] : memref<2x2x4x256xf32, #tpu.memory_space<vmem>>, vector<1x1x4x256xf32>
    %136 = vector.shape_cast %135 : vector<1x1x4x256xf32> to vector<4x256xf32>
    %137 = vector.shape_cast %134 : vector<4x256xf32> to vector<1x1x4x256xf32>
    tpu.vector_store %arg3[%c0_49, %c0_50, %c0_51, %c0_52], %137 {strides = array<i32>} : memref<2x2x4x256xf32, #tpu.memory_space<vmem>>, vector<1x1x4x256xf32>,
    %138 = vector.extract_strided_slice %132 {offsets = [0, 0, 0], sizes = [1, 4, 256], strides = [1, 1, 1]} : vector<2x4x256xf32> to vector<1x4x256xf32>
    %139 = vector.shape_cast %138 : vector<1x4x256xf32> to vector<4x256xf32>
    %c0_53 = arith.constant 0 : index
    %c1_54 = arith.constant 1 : index
    %c0_55 = arith.constant 0 : index
    %c0_56 = arith.constant 0 : index
    %140 = vector.load %arg3[%c0_53, %c1_54, %c0_55, %c0_56] : memref<2x2x4x256xf32, #tpu.memory_space<vmem>>, vector<1x1x4x256xf32>
    %141 = vector.shape_cast %140 : vector<1x1x4x256xf32> to vector<4x256xf32>
    %142 = vector.shape_cast %139 : vector<4x256xf32> to vector<1x1x4x256xf32>
    tpu.vector_store %arg3[%c0_53, %c1_54, %c0_55, %c0_56], %142 {strides = array<i32>} : memref<2x2x4x256xf32, #tpu.memory_space<vmem>>, vector<1x1x4x256xf32>,
    %143 = vector.extract_strided_slice %124 {offsets = [1, 0, 0], sizes = [1, 4, 256], strides = [1, 1, 1]} : vector<2x4x256xf32> to vector<1x4x256xf32>
    %144 = vector.shape_cast %143 : vector<1x4x256xf32> to vector<4x256xf32>
    %c1_57 = arith.constant 1 : index
    %c0_58 = arith.constant 0 : index
    %c0_59 = arith.constant 0 : index
    %c0_60 = arith.constant 0 : index
    %145 = vector.load %arg3[%c1_57, %c0_58, %c0_59, %c0_60] : memref<2x2x4x256xf32, #tpu.memory_space<vmem>>, vector<1x1x4x256xf32>
    %146 = vector.shape_cast %145 : vector<1x1x4x256xf32> to vector<4x256xf32>
    %147 = vector.shape_cast %144 : vector<4x256xf32> to vector<1x1x4x256xf32>
    tpu.vector_store %arg3[%c1_57, %c0_58, %c0_59, %c0_60], %147 {strides = array<i32>} : memref<2x2x4x256xf32, #tpu.memory_space<vmem>>, vector<1x1x4x256xf32>,
    %148 = vector.extract_strided_slice %132 {offsets = [1, 0, 0], sizes = [1, 4, 256], strides = [1, 1, 1]} : vector<2x4x256xf32> to vector<1x4x256xf32>
    %149 = vector.shape_cast %148 : vector<1x4x256xf32> to vector<4x256xf32>
    %c1_61 = arith.constant 1 : index
    %c1_62 = arith.constant 1 : index
    %c0_63 = arith.constant 0 : index
    %c0_64 = arith.constant 0 : index
    %150 = vector.load %arg3[%c1_61, %c1_62, %c0_63, %c0_64] : memref<2x2x4x256xf32, #tpu.memory_space<vmem>>, vector<1x1x4x256xf32>
    %151 = vector.shape_cast %150 : vector<1x1x4x256xf32> to vector<4x256xf32>
    %152 = vector.shape_cast %149 : vector<4x256xf32> to vector<1x1x4x256xf32>
    tpu.vector_store %arg3[%c1_61, %c1_62, %c0_63, %c0_64], %152 {strides = array<i32>} : memref<2x2x4x256xf32, #tpu.memory_space<vmem>>, vector<1x1x4x256xf32>,
    return
  }
  func.func @transform_0(%arg0: i32) -> (i32, i32, i32, i32) {
    %c0_i32 = arith.constant 0 : i32
    %c0_i32_0 = arith.constant 0 : i32
    %c0_i32_1 = arith.constant 0 : i32
    %c0_i32_2 = arith.constant 0 : i32
    %c0_i32_3 = arith.constant 0 : i32
    return %c0_i32, %c0_i32_0, %c0_i32_1, %c0_i32_2 : i32, i32, i32, i32
  }
  func.func @transform_1(%arg0: i32) -> (i32, i32, i32) {
    %c0_i32 = arith.constant 0 : i32
    %c0_i32_0 = arith.constant 0 : i32
    %c0_i32_1 = arith.constant 0 : i32
    %c0_i32_2 = arith.constant 0 : i32
    return %c0_i32, %c0_i32_0, %c0_i32_1 : i32, i32, i32
  }
  func.func @transform_2(%arg0: i32) -> (i32, i32, i32, i32) {
    %c0_i32 = arith.constant 0 : i32
    %c0_i32_0 = arith.constant 0 : i32
    %c0_i32_1 = arith.constant 0 : i32
    %c0_i32_2 = arith.constant 0 : i32
    %c0_i32_3 = arith.constant 0 : i32
    return %c0_i32, %c0_i32_0, %c0_i32_1, %c0_i32_2 : i32, i32, i32, i32
  }
  func.func @transform_3(%arg0: i32) -> (i32, i32, i32) {
    %c0_i32 = arith.constant 0 : i32
    %c0_i32_0 = arith.constant 0 : i32
    %c0_i32_1 = arith.constant 0 : i32
    %c0_i32_2 = arith.constant 0 : i32
    return %c0_i32, %c0_i32_0, %c0_i32_1 : i32, i32, i32
  }
}

</mosaic_0001>

<llo_original>
// kernel: complex_batch_norm.1
$region0: #{complex_batch_norm.1}
  #allocation0 [shape = 'u32[]', space=smem, size = 0x4, offset = 0x4, fixed_abs, tag = 'smem constant byte address 0x4 - core index']
  #allocation1 [shape = 'u32[144,128]{1,0:T(1,128)}', space=vmem, size = 0x12000, scoped, tag = 'internal scratch']
  %s0 = inlined_call_operand.vmem [shape: f32[2,2,4,256], index: 0, kind: input, shape index: {}]
  %s1 = inlined_call_operand.vmem [shape: f32[5,4,1], index: 1, kind: input, shape index: {}]
  %s2 = inlined_call_operand.vmem [shape: f32[2,2,4,256], index: 2, kind: output, shape index: {0}]
  %s3 = inlined_call_operand.hbm [shape: f32[5,4,1], index: 3, kind: output, shape index: {1}]
  %4 = xla_tuple %s2, %s3
  %s5 = sld [smem:[#allocation0]]
  $region26: #{complex_batch_norm.1} parent=0
    _
  %s7 = ssub.s32 1, %s5
  %s8 = scalar_select 0, %s7, %s5
  $region1: #{complex_batch_norm.1} parent=0
    #allocation2 [shape = 'u8[10240]{0}', space=vmem, size = 0x2800, scoped, tag = 'output window, operand 1, single buffered']
    #allocation3 [shape = 's32[1]{0}', space=sflag, size = 0x4, scoped, tag = 'scoped memory for complex_batch_norm.1']
    %9 = vsyncpa [#allocation3], 0
    // Predicated region
    $region2: #{complex_batch_norm.1} parent=1 // pred_check
      _
    $region3: #{complex_batch_norm.1} parent=1 // pred_check_branch
      %11 = sbr.rel (0) target = $region5
    $region4: #{complex_batch_norm.1} parent=1 // pred_region
      _
    $region5: #{complex_batch_norm.1} parent=1 // pred_fallthru
      _
    // Predicated region
    $region6: #{complex_batch_norm.1} parent=1 // pred_check
      _
    $region7: #{complex_batch_norm.1} parent=1 // pred_check_branch
      %13 = sbr.rel (0) target = $region9
    $region8: #{complex_batch_norm.1} parent=1 // pred_region
      _
    $region9: #{complex_batch_norm.1} parent=1 // pred_fallthru
      _
    %v14 = vld [vmem:[%s0] sm:$0xff]
    %v15 = vld [vmem:[%s0 + $0x8] sm:$0xff]
    %v16 = vld [vmem:[%s0 + $0x10] sm:$0xff]
    %v17 = vld [vmem:[%s0 + $0x18] sm:$0xff]
    %v20 = vcombine.high %v14, %v14
    %v21 = vcombine.high %v16, %v16
    %vm24 = vcmask 1043456
    %v25 = vsel %vm24, %v14, 0.0
    %v26 = vsel %vm24, %v20, 0.0
    %v27 = vadd.f32 %v25, %v26
    %28 = vadd.xlane.f32.xlu0 %v27
    %v29 = vpop.xlane.xlu0 %28
    %v30 = vsel %vm24, %v16, 0.0
    %v31 = vsel %vm24, %v21, 0.0
    %v32 = vadd.f32 %v30, %v31
    %33 = vadd.xlane.f32.xlu0 %v32
    %v34 = vpop.xlane.xlu0 %33
    %v35 = vsel %vm24, %v29, 0.0
    %v36 = vsel %vm24, %v34, 0.0
    %v37 = vadd.f32 %v35, %v36
    %v38 = vmul.f32 %v37, 0.001953125
    %v41 = vcombine.high %v15, %v15
    %v42 = vcombine.high %v17, %v17
    %v45 = vsel %vm24, %v15, 0.0
    %v46 = vsel %vm24, %v41, 0.0
    %v47 = vadd.f32 %v45, %v46
    %48 = vadd.xlane.f32.xlu0 %v47
    %v49 = vpop.xlane.xlu0 %48
    %v50 = vsel %vm24, %v17, 0.0
    %v51 = vsel %vm24, %v42, 0.0
    %v52 = vadd.f32 %v50, %v51
    %53 = vadd.xlane.f32.xlu0 %v52
    %v54 = vpop.xlane.xlu0 %53
    %v55 = vsel %vm24, %v49, 0.0
    %v56 = vsel %vm24, %v54, 0.0
    %v57 = vadd.f32 %v55, %v56
    %v58 = vmul.f32 %v57, 0.001953125
    %v61 = vunpack.c.l.s4 839922192
    %v62 = vunpack.c.0.s8 %v61
    %v63 = vlaneseq
    %v64 = vshrl.u32 %v63, 7
    %v65 = vsub.s32 %v62, %v64
    %v66 = vrot.slane %v38, %v65
    %v68 = vsub.f32 %v14, %v66
    %v69 = vsub.f32 %v16, %v66
    %v72 = vunpack.c.l.s4 839922192
    %v73 = vunpack.c.0.s8 %v72
    %v74 = vlaneseq
    %v75 = vshrl.u32 %v74, 7
    %v76 = vsub.s32 %v73, %v75
    %v77 = vrot.slane %v58, %v76
    %v79 = vsub.f32 %v15, %v77
    %v80 = vsub.f32 %v17, %v77
    %v81 = vmul.f32 %v68, %v68
    %v82 = vmul.f32 %v69, %v69
    %v85 = vcombine.high %v81, %v81
    %v86 = vcombine.high %v82, %v82
    %v89 = vsel %vm24, %v81, 0.0
    %v90 = vsel %vm24, %v85, 0.0
    %v91 = vadd.f32 %v89, %v90
    %92 = vadd.xlane.f32.xlu0 %v91
    %v93 = vpop.xlane.xlu0 %92
    %v94 = vsel %vm24, %v82, 0.0
    %v95 = vsel %vm24, %v86, 0.0
    %v96 = vadd.f32 %v94, %v95
    %97 = vadd.xlane.f32.xlu0 %v96
    %v98 = vpop.xlane.xlu0 %97
    %v99 = vsel %vm24, %v93, 0.0
    %v100 = vsel %vm24, %v98, 0.0
    %v101 = vadd.f32 %v99, %v100
    %v102 = vmul.f32 %v101, 0.001953125
    %v103 = vmul.f32 %v68, %v79
    %v104 = vmul.f32 %v69, %v80
    %v107 = vcombine.high %v103, %v103
    %v108 = vcombine.high %v104, %v104
    %v111 = vsel %vm24, %v103, 0.0
    %v112 = vsel %vm24, %v107, 0.0
    %v113 = vadd.f32 %v111, %v112
    %114 = vadd.xlane.f32.xlu0 %v113
    %v115 = vpop.xlane.xlu0 %114
    %v116 = vsel %vm24, %v104, 0.0
    %v117 = vsel %vm24, %v108, 0.0
    %v118 = vadd.f32 %v116, %v117
    %119 = vadd.xlane.f32.xlu0 %v118
    %v120 = vpop.xlane.xlu0 %119
    %v121 = vsel %vm24, %v115, 0.0
    %v122 = vsel %vm24, %v120, 0.0
    %v123 = vadd.f32 %v121, %v122
    %v124 = vmul.f32 %v123, 0.001953125
    %v125 = vmul.f32 %v79, %v79
    %v126 = vmul.f32 %v80, %v80
    %v129 = vcombine.high %v125, %v125
    %v130 = vcombine.high %v126, %v126
    %v133 = vsel %vm24, %v125, 0.0
    %v134 = vsel %vm24, %v129, 0.0
    %v135 = vadd.f32 %v133, %v134
    %136 = vadd.xlane.f32.xlu0 %v135
    %v137 = vpop.xlane.xlu0 %136
    %v138 = vsel %vm24, %v126, 0.0
    %v139 = vsel %vm24, %v130, 0.0
    %v140 = vadd.f32 %v138, %v139
    %141 = vadd.xlane.f32.xlu0 %v140
    %v142 = vpop.xlane.xlu0 %141
    %v143 = vsel %vm24, %v137, 0.0
    %v144 = vsel %vm24, %v142, 0.0
    %v145 = vadd.f32 %v143, %v144
    %v146 = vmul.f32 %v145, 0.001953125
    %vm147 = vcmask 3072
    %148 = vst.msk [vmem:[#allocation2] sm:$0xf] %vm147, %v38
    %s149 = scalar_lea.vmem [#allocation2], 4
    %150 = vst.msk [vmem:[%s149] sm:$0xf] %vm147, %v58
    %s151 = scalar_lea.vmem [#allocation2], 8
    %152 = vst.msk [vmem:[%s151] sm:$0xf] %vm147, %v102
    %s153 = scalar_lea.vmem [#allocation2], 12
    %154 = vst.msk [vmem:[%s153] sm:$0xf] %vm147, %v124
    %s155 = scalar_lea.vmem [#allocation2], 16
    %156 = vst.msk [vmem:[%s155] sm:$0xf] %vm147, %v146
    %v157 = vld [vmem:[%s1] sm:$0xf]
    %s158 = scalar_lea.vmem %s1, 4
    %v159 = vld [vmem:[%s158] sm:$0xf]
    %s160 = scalar_lea.vmem %s1, 8
    %v161 = vld [vmem:[%s160] sm:$0xf]
    %s162 = scalar_lea.vmem %s1, 12
    %v163 = vld [vmem:[%s162] sm:$0xf]
    %s164 = scalar_lea.vmem %s1, 16
    %v165 = vld [vmem:[%s164] sm:$0xf]
    %v166 = vadd.f32 %v102, 1e-05
    %v167 = vadd.f32 %v146, 1e-05
    %v168 = vadd.f32 %v166, %v167
    %v169 = vmul.f32 %v166, %v167
    %v170 = vmul.f32 %v124, %v124
    %v171 = vsub.f32 %v169, %v170
    %v172 = vmax.f32 %v171, 0.0
    %v173 = vrsqrt.pop %v172
    %v174 = vmul.f32 %v172, %v173
    %vm175 = vcmp.eq.f32.partialorder %v172, inf
    %v176 = vsel %vm175, %v172, %v174
    %vm177 = vcmp.eq.f32.partialorder %v172, 0.0
    %v178 = vand.u32 %v172, 2147483648
    %v179 = vsel %vm177, %v178, %v176
    %v180 = vmul.f32 %v179, 2.0
    %v181 = vadd.f32 %v168, %v180
    %v182 = vrsqrt.pop %v181
    %v183 = vmul.f32 %v181, %v182
    %vm184 = vcmp.eq.f32.partialorder %v181, inf
    %v185 = vsel %vm184, %v181, %v183
    %vm186 = vcmp.eq.f32.partialorder %v181, 0.0
    %v187 = vand.u32 %v181, 2147483648
    %v188 = vsel %vm186, %v187, %v185
    %v189 = vmul.f32 %v179, %v188
    %v190 = vrcp.pop %v189
    %v191 = vmul.f32 1.0, %v190
    %v192 = vadd.f32 %v179, %v167
    %v193 = vmul.f32 %v192, %v191
    %v194 = vadd.f32 %v179, %v166
    %v195 = vmul.f32 %v194, %v191
    %v196 = vsub.f32 0.0, %v124
    %v197 = vmul.f32 %v196, %v191
    %v198 = vmul.f32 %v157, %v193
    %v199 = vmul.f32 %v159, %v197
    %v200 = vadd.f32 %v198, %v199
    %v201 = vmul.f32 %v157, %v197
    %v202 = vmul.f32 %v159, %v195
    %v203 = vadd.f32 %v201, %v202
    %v204 = vmul.f32 %v159, %v193
    %v205 = vmul.f32 %v161, %v197
    %v206 = vadd.f32 %v204, %v205
    %v207 = vmul.f32 %v161, %v195
    %v208 = vadd.f32 %v199, %v207
    %210 = vset.pattern.permute.xlu0 0
    %211 = vperm.xlu0 %210, %v200
    %v212 = vpop.permute.xlu0 %211
    %v216 = vcombine.high %v68, %v68
    %v217 = vcombine.high %v69, %v69
    %v220 = vmul.f32 %v212, %v68
    %v221 = vmul.f32 %v212, %v216
    %v222 = vmul.f32 %v212, %v69
    %v223 = vmul.f32 %v212, %v217
    %225 = vset.pattern.permute.xlu0 0
    %226 = vperm.xlu0 %225, %v203
    %v227 = vpop.permute.xlu0 %226
    %v231 = vcombine.high %v79, %v79
    %v232 = vcombine.high %v80, %v80
    %v235 = vmul.f32 %v227, %v79
    %v236 = vmul.f32 %v227, %v231
    %v237 = vmul.f32 %v227, %v80
    %v238 = vmul.f32 %v227, %v232
    %v239 = vadd.f32 %v220, %v235
    %v240 = vadd.f32 %v221, %v236
    %v241 = vadd.f32 %v222, %v237
    %v242 = vadd.f32 %v223, %v238
    %244 = vset.pattern.permute.xlu0 0
    %245 = vperm.xlu0 %244, %v163
    %v246 = vpop.permute.xlu0 %245
    %v248 = vadd.f32 %v239, %v246
    %v249 = vadd.f32 %v240, %v246
    %v250 = vadd.f32 %v241, %v246
    %v251 = vadd.f32 %v242, %v246
    %253 = vset.pattern.permute.xlu0 0
    %254 = vperm.xlu0 %253, %v206
    %v255 = vpop.permute.xlu0 %254
    %v257 = vmul.f32 %v255, %v68
    %v258 = vmul.f32 %v255, %v216
    %v259 = vmul.f32 %v255, %v69
    %v260 = vmul.f32 %v255, %v217
    %262 = vset.pattern.permute.xlu0 0
    %263 = vperm.xlu0 %262, %v208
    %v264 = vpop.permute.xlu0 %263
    %v266 = vmul.f32 %v264, %v79
    %v267 = vmul.f32 %v264, %v231
    %v268 = vmul.f32 %v264, %v80
    %v269 = vmul.f32 %v264, %v232
    %v270 = vadd.f32 %v257, %v266
    %v271 = vadd.f32 %v258, %v267
    %v272 = vadd.f32 %v259, %v268
    %v273 = vadd.f32 %v260, %v269
    %275 = vset.pattern.permute.xlu0 0
    %276 = vperm.xlu0 %275, %v165
    %v277 = vpop.permute.xlu0 %276
    %v279 = vadd.f32 %v270, %v277
    %v280 = vadd.f32 %v271, %v277
    %v281 = vadd.f32 %v272, %v277
    %v282 = vadd.f32 %v273, %v277
    %v285 = vcombine.low %v248, %v249
    %287 = vst [vmem:[%s2] sm:$0xff] %v285
    %v290 = vcombine.low %v279, %v280
    %s292 = scalar_lea.vmem %s2, 8
    %293 = vst [vmem:[%s292] sm:$0xff] %v290
    %v296 = vcombine.low %v250, %v251
    %s298 = scalar_lea.vmem %s2, 16
    %299 = vst [vmem:[%s298] sm:$0xff] %v296
    %v302 = vcombine.low %v281, %v282
    %s304 = scalar_lea.vmem %s2, 24
    %305 = vst [vmem:[%s304] sm:$0xff] %v302
    // Predicated region
    $region10: #{complex_batch_norm.1} parent=1 // pred_check
      _
    $region11: #{complex_batch_norm.1} parent=1 // pred_check_branch
      %307 = sbr.rel (0) target = $region13
    $region12: #{complex_batch_norm.1} parent=1 // pred_region
      _
    $region13: #{complex_batch_norm.1} parent=1 // pred_fallthru
      _
    // Predicated region
    $region14: #{complex_batch_norm.1} parent=1 // pred_check
      _
    $region15: #{complex_batch_norm.1} parent=1 // pred_check_branch
      %309 = sbr.rel (0) target = $region17
    $region16: #{complex_batch_norm.1} parent=1 // pred_region
      %s311 = ssub.s32 320, 320
      %312 = vsyncadd [#allocation3], %s311
      %s313 = sshll.u32 [#allocation2], 4
      %s314 = int_to_ptr.vmem [resolvable:$true] %s313
      %319 = dma.vmem_to_hbm [thread:$0]  %s314, 320, %s3, [#allocation3], 64, 64, 4
    $region17: #{complex_batch_norm.1} parent=1 // pred_fallthru
      _
    // Predicated region
    $region18: #{complex_batch_norm.1} parent=1 // pred_check
      _
    $region19: #{complex_batch_norm.1} parent=1 // pred_check_branch
      %321 = sbr.rel (0) target = $region21
    $region20: #{complex_batch_norm.1} parent=1 // pred_region
      _
    $region21: #{complex_batch_norm.1} parent=1 // pred_fallthru
      _
    // Predicated region
    $region22: #{complex_batch_norm.1} parent=1 // pred_check
      _
    $region23: #{complex_batch_norm.1} parent=1 // pred_check_branch
      %323 = sbr.rel (0) target = $region25
    $region24: #{complex_batch_norm.1} parent=1 // pred_region
      %324 = dma.done [#allocation3], 320
    $region25: #{complex_batch_norm.1} parent=1 // pred_fallthru
      _
    %325 = vsyncpa [#allocation3], 1

</llo_original>
